<compile_context>
chip_gen: v7x
topology: tpu7x:2x2x1
jax: 0.10.0
libtpu: 0.0.40
codegen_flags: <defaults>
</compile_context>

<pallas_src>
import jax
import jax.numpy as jnp
from jax.experimental import pallas as pl
from jax.experimental.pallas import tpu as pltpu


def _round_up(x: int, m: int) -> int:
    return ((x + m - 1) // m) * m


def _class_embedding_kernel(idx_ref, table_ref, out_ref):
    # idx_ref:   (TB, 1)        int32 effective class indices for this tile.
    # table_ref: (num_rows,d_cp) VMEM-resident (single-buffered) table.
    # out_ref:   (TB, d_cp)     gathered embeddings for this tile (lane-dense).
    idx = idx_ref[...]                                         # (TB, 1)
    tb = out_ref.shape[0]
    num_rows = table_ref.shape[0]
    row_ids = jax.lax.broadcasted_iota(jnp.int32, (tb, num_rows), 1)
    one_hot = (row_ids == idx).astype(table_ref.dtype)         # (TB, num_rows)
    # Exact gather: each one-hot row has a single 1.0, so the MXU matmul
    # reproduces the stored table row bit-exactly (also for bf16 tables).
    out_ref[...] = jnp.dot(
        one_hot, table_ref[...],
        preferred_element_type=jnp.float32,
    ).astype(out_ref.dtype)


def embed_conditioning_pallas(table, label, label_mask=None, *,
                              max_tile=512,
                              min_pallas_batch=16,
                              vmem_budget_bytes=48 << 20):
    """out[b] = table[label[b]]  (table[-1] where label_mask[b] is True)."""
    num_rows, d_c = table.shape
    null_idx = num_rows - 1          # last row = unconditional / null embedding
    batch = label.shape[0]

    label = label.astype(jnp.int32)
    if label_mask is not None:
        eff_idx = jnp.where(label_mask, jnp.int32(null_idx), label)
    else:
        eff_idx = label
    # TODO(synk): out-of-range labels gather a silent zero row here, whereas
    # torch.nn.Embedding would raise; add a clamp/debug_check if needed.

    # Tiny batch: kernel dispatch + pad/slice overhead dominates the few-KB
    # gather -> plain XLA (ideally this gather is fused into the downstream
    # DiT/UNet conditioning kernel by the subclass).
    if batch < min_pallas_batch:
        return jnp.take(table, eff_idx, axis=0)

    itemsize = jnp.dtype(table.dtype).itemsize
    d_cp = _round_up(d_c, 128)       # lane-dense output stores
    if d_cp != d_c:
        table = jnp.pad(table, ((0, 0), (0, d_cp - d_c)))

    # ---- batch tiling / VMEM budgeting ---------------------------------
    batch8 = _round_up(batch, 8)
    table_bytes = num_rows * d_cp * itemsize
    num_rows_l = _round_up(num_rows, 128)

    def _tile_bytes(tb):
        out_b = 2 * tb * d_cp * itemsize       # double-buffered output tile
        idx_b = 2 * tb * 128 * 4               # (tb,1) lane-pads to (tb,128)
        oh_b = tb * num_rows_l * 4             # one-hot intermediate
        return out_b + idx_b + oh_b

    tb_cap = min(max_tile, batch8)
    # Keep the O(TB x num_rows) one-hot cost bounded for large class counts.
    if num_rows_l > 256:
        tb_cap = min(tb_cap, 256)
    # Ensure >= 2 grid steps so the "parallel" axis can split across v7x TCs.
    if batch8 >= 16:
        tb_cap = min(tb_cap, _round_up(pl.cdiv(batch8, 2), 8))
    # Shrink the tile until (table + pipeline buffers) fits the VMEM budget.
    # (The resident table itself is a fixed cost by design.)
    while tb_cap > 8 and table_bytes + _tile_bytes(tb_cap) > vmem_budget_bytes:
        tb_cap -= 8
    tb_cap = max(tb_cap, 8)

    # Avoid over-padding: largest multiple of 8 <= tb_cap dividing batch8
    # (8 always does), so we only ever pad the batch to a multiple of 8.
    tb = 8
    for cand in range(tb_cap - tb_cap % 8, 7, -8):
        if batch8 % cand == 0:
            tb = cand
            break

    eff_idx = jnp.pad(eff_idx, (0, batch8 - batch)).reshape(batch8, 1)
    grid = (batch8 // tb,)

    vmem_need = table_bytes + _tile_bytes(tb) + (2 << 20)
    vmem_limit = int(min(max(vmem_need, 16 << 20), 56 << 20))

    cost = pl.CostEstimate(
        flops=2 * batch8 * num_rows * d_cp,
        transcendentals=0,
        bytes_accessed=int(table_bytes + batch8 * 4 + batch8 * d_cp * itemsize),
    )

    idx_spec = pl.BlockSpec((tb, 1), lambda b: (b, 0))
    out_spec = pl.BlockSpec((tb, d_cp), lambda b: (b, 0))

    def _call(table_spec):
        return pl.pallas_call(
            _class_embedding_kernel,
            out_shape=jax.ShapeDtypeStruct((batch8, d_cp), table.dtype),
            grid=grid,
            in_specs=[idx_spec, table_spec],
            out_specs=out_spec,
            compiler_params=pltpu.CompilerParams(
                dimension_semantics=("parallel",),
                vmem_limit_bytes=vmem_limit,
            ),
            cost_estimate=cost,
        )(eff_idx, table)

    try:
        # Constant index_map -> single-buffer the resident table (halves its
        # VMEM footprint; irrelevant for tiny tables, vital for big ones).
        out = _call(pl.BlockSpec((num_rows, d_cp), lambda b: (0, 0),
                                 pipeline_mode=pl.Buffered(1)))
    except Exception:
        # Fallback for environments where Buffered(1) is not accepted.
        out = _call(pl.BlockSpec((num_rows, d_cp), lambda b: (0, 0)))

    return out[:batch, :d_c]


class PallasDenoiser:
    """JAX/Pallas port of the concrete parts of `Denoiser`.

    Holds a class-embedding table of shape [num_classes + 1, d_conditioning];
    the extra (last) row is the null class used when `label_mask` is set.
    """

    def __init__(self, num_classes, d_conditioning: int, key,
                 param_dtype=jnp.float32):
        self.num_classes = num_classes
        self._d_conditioning = d_conditioning
        self.labels = num_classes is not None
        if self.labels:
            # ClassEmbeddingParameters equivalent. Use param_dtype=jnp.bfloat16
            # to halve table VMEM/DMA if the model consumes bf16 conditioning;
            # the one-hot gather stays exact in the stored precision.
            self.class_embedding_table = (
                0.02 * jax.random.normal(
                    key, (num_classes + 1, d_conditioning), dtype=jnp.float32)
            ).astype(param_dtype)

    @property
    def d_conditioning(self) -> int:
        return self._d_conditioning

    @property
    def d_time_embedding(self) -> int:
        return self.d_conditioning

    def embed_conditioning(self, label=None, label_mask=None):
        if not self.labels:
            return None
        assert label is not None
        return embed_conditioning_pallas(
            self.class_embedding_table, label, label_mask)

    # TODO(synk): `Denoiser.forward` is abstract in the reference module (no
    # concrete compute to port); subclasses (DiT/UNet denoisers) define it.
    # freeze()/on_sampling_start()/on_sampling_end() are non-tensor hooks.


if __name__ == "__main__":
    key = jax.random.PRNGKey(0)
    k_table, k_label, k_mask = jax.random.split(key, 3)

    num_classes = 10
    d_conditioning = 128
    denoiser = PallasDenoiser(num_classes, d_conditioning, k_table)

    # --- Pallas path (batch large enough that the kernel is used) ---------
    batch = 32
    label = jax.random.randint(k_label, (batch,), 0, num_classes,
                               dtype=jnp.int32)
    label_mask = jax.random.bernoulli(k_mask, 0.25, (batch,))

    emb = jax.block_until_ready(
        denoiser.embed_conditioning(label=label, label_mask=label_mask))
    eff_idx = jnp.where(label_mask, num_classes, label)
    ref = jnp.take(denoiser.class_embedding_table, eff_idx, axis=0)
    assert emb.shape == (batch, d_conditioning)
    assert jnp.allclose(emb, ref), "Pallas class-embedding (masked) mismatch"

    # Unmasked Pallas path.
    emb2 = jax.block_until_ready(denoiser.embed_conditioning(label=label))
    ref2 = jnp.take(denoiser.class_embedding_table, label, axis=0)
    assert jnp.allclose(emb2, ref2), "Pallas class-embedding (no mask) mismatch"

    # Non-128-multiple conditioning width (exercises lane padding) and a
    # batch that is not a multiple of the tile size.
    denoiser2 = PallasDenoiser(num_classes, 192, k_table)
    label3 = jax.random.randint(k_label, (20,), 0, num_classes,
                                dtype=jnp.int32)
    emb3 = jax.block_until_ready(denoiser2.embed_conditioning(label=label3))
    ref3 = jnp.take(denoiser2.class_embedding_table, label3, axis=0)
    assert emb3.shape == (20, 192)
    assert jnp.allclose(emb3, ref3), "Pallas class-embedding (padded d_c) mismatch"

    # Tiny-batch CFG case: XLA fallback (kernel dispatch would dominate).
    label4 = jax.random.randint(k_label, (4,), 0, num_classes,
                                dtype=jnp.int32)
    mask4 = jnp.array([False, True, False, True], dtype=jnp.bool_)
    emb4 = jax.block_until_ready(
        denoiser.embed_conditioning(label=label4, label_mask=mask4))
    ref4 = jnp.take(denoiser.class_embedding_table,
                    jnp.where(mask4, num_classes, label4), axis=0)
    assert jnp.allclose(emb4, ref4), "tiny-batch fallback mismatch"

    print("KERNEL_OK")
</pallas_src>

<mosaic_0001>
module attributes {stable_mosaic.version = 11 : i64} {
  func.func @_class_embedding_kernel(%arg0: i32, %arg1: memref<16x1xi32, #tpu.memory_space<vmem>>, %arg2: memref<11x128xf32, #tpu.memory_space<vmem>>, %arg3: memref<16x128xf32, #tpu.memory_space<vmem>>) attributes {dimension_semantics = [#tpu.dimension_semantics<parallel>], iteration_bounds = array<i64: 2>, scalar_prefetch = 0 : i64, scratch_operands = 0 : i64, tpu.core_type = #tpu.core_type<tc>, window_params = [{transform_indices = @transform_0, window_bounds = array<i64: 16, 1>}, {pipeline_mode = #tpu.pipeline_mode<synchronous>, transform_indices = @transform_1, window_bounds = array<i64: 11, 128>}, {transform_indices = @transform_2, window_bounds = array<i64: 16, 128>}]} {
    %c0 = arith.constant 0 : index
    %c0_0 = arith.constant 0 : index
    %0 = vector.load %arg1[%c0, %c0_0] : memref<16x1xi32, #tpu.memory_space<vmem>>, vector<16x1xi32>
    %1 = tpu.iota {dimensions = array<i32: 1>} : vector<16x11xi32>
    %2 = vector.broadcast %0 : vector<16x1xi32> to vector<16x11xi32>
    %3 = arith.cmpi eq, %1, %2 : vector<16x11xi32>
    %4 = arith.extui %3 : vector<16x11xi1> to vector<16x11xi32>
    %5 = arith.sitofp %4 : vector<16x11xi32> to vector<16x11xf32>
    %c0_1 = arith.constant 0 : index
    %c0_2 = arith.constant 0 : index
    %6 = vector.load %arg2[%c0_1, %c0_2] : memref<11x128xf32, #tpu.memory_space<vmem>>, vector<11x128xf32>
    %cst = arith.constant dense<0.000000e+00> : vector<16x128xf32>
    %7 = tpu.matmul %5, %6, %cst {dimension_numbers = #tpu.dot_dimension_numbers<[1], [0], [0], [1], [0, 0, 1, 1], [], []>} : vector<16x11xf32>, vector<11x128xf32>, vector<16x128xf32> -> vector<16x128xf32>
    %c0_3 = arith.constant 0 : index
    %c0_4 = arith.constant 0 : index
    %8 = vector.load %arg3[%c0_3, %c0_4] : memref<16x128xf32, #tpu.memory_space<vmem>>, vector<16x128xf32>
    tpu.vector_store %arg3[%c0_3, %c0_4], %7 {strides = array<i32>} : memref<16x128xf32, #tpu.memory_space<vmem>>, vector<16x128xf32>,
    return
  }
  func.func @transform_0(%arg0: i32) -> (i32, i32) {
    %c0_i32 = arith.constant 0 : i32
    %c0_i32_0 = arith.constant 0 : i32
    return %arg0, %c0_i32 : i32, i32
  }
  func.func @transform_1(%arg0: i32) -> (i32, i32) {
    %c0_i32 = arith.constant 0 : i32
    %c0_i32_0 = arith.constant 0 : i32
    %c0_i32_1 = arith.constant 0 : i32
    return %c0_i32, %c0_i32_0 : i32, i32
  }
  func.func @transform_2(%arg0: i32) -> (i32, i32) {
    %c0_i32 = arith.constant 0 : i32
    %c0_i32_0 = arith.constant 0 : i32
    return %arg0, %c0_i32 : i32, i32
  }
}

module attributes {stable_mosaic.version = 11 : i64} {
  func.func @_class_embedding_kernel(%arg0: i32, %arg1: memref<16x1xi32, #tpu.memory_space<vmem>>, %arg2: memref<11x128xf32, #tpu.memory_space<vmem>>, %arg3: memref<16x128xf32, #tpu.memory_space<vmem>>) attributes {dimension_semantics = [#tpu.dimension_semantics<parallel>], iteration_bounds = array<i64: 2>, scalar_prefetch = 0 : i64, scratch_operands = 0 : i64, tpu.core_type = #tpu.core_type<tc>, window_params = [{transform_indices = @transform_0, window_bounds = array<i64: 16, 1>}, {pipeline_mode = #tpu.pipeline_mode<synchronous>, transform_indices = @transform_1, window_bounds = array<i64: 11, 128>}, {transform_indices = @transform_2, window_bounds = array<i64: 16, 128>}]} {
    %c0 = arith.constant 0 : index
    %c0_0 = arith.constant 0 : index
    %0 = vector.load %arg1[%c0, %c0_0] : memref<16x1xi32, #tpu.memory_space<vmem>>, vector<16x1xi32>
    %1 = tpu.iota {dimensions = array<i32: 1>} : vector<16x11xi32>
    %2 = vector.broadcast %0 : vector<16x1xi32> to vector<16x11xi32>
    %3 = arith.cmpi eq, %1, %2 : vector<16x11xi32>
    %4 = arith.extui %3 : vector<16x11xi1> to vector<16x11xi32>
    %5 = arith.sitofp %4 : vector<16x11xi32> to vector<16x11xf32>
    %c0_1 = arith.constant 0 : index
    %c0_2 = arith.constant 0 : index
    %6 = vector.load %arg2[%c0_1, %c0_2] : memref<11x128xf32, #tpu.memory_space<vmem>>, vector<11x128xf32>
    %cst = arith.constant dense<0.000000e+00> : vector<16x128xf32>
    %7 = tpu.matmul %5, %6, %cst {dimension_numbers = #tpu.dot_dimension_numbers<[1], [0], [0], [1], [0, 0, 1, 1], [], []>} : vector<16x11xf32>, vector<11x128xf32>, vector<16x128xf32> -> vector<16x128xf32>
    %c0_3 = arith.constant 0 : index
    %c0_4 = arith.constant 0 : index
    %8 = vector.load %arg3[%c0_3, %c0_4] : memref<16x128xf32, #tpu.memory_space<vmem>>, vector<16x128xf32>
    tpu.vector_store %arg3[%c0_3, %c0_4], %7 {strides = array<i32>} : memref<16x128xf32, #tpu.memory_space<vmem>>, vector<16x128xf32>,
    return
  }
  func.func @transform_0(%arg0: i32) -> (i32, i32) {
    %c0_i32 = arith.constant 0 : i32
    %c0_i32_0 = arith.constant 0 : i32
    return %arg0, %c0_i32 : i32, i32
  }
  func.func @transform_1(%arg0: i32) -> (i32, i32) {
    %c0_i32 = arith.constant 0 : i32
    %c0_i32_0 = arith.constant 0 : i32
    %c0_i32_1 = arith.constant 0 : i32
    return %c0_i32, %c0_i32_0 : i32, i32
  }
  func.func @transform_2(%arg0: i32) -> (i32, i32) {
    %c0_i32 = arith.constant 0 : i32
    %c0_i32_0 = arith.constant 0 : i32
    return %arg0, %c0_i32 : i32, i32
  }
}

</mosaic_0001>

<llo_original>
// kernel: tpu_custom_call.1
$region0: #{tpu_custom_call.1}
  #allocation0 [shape = 'u32[]', space=smem, size = 0x4, offset = 0x4, fixed_abs, tag = 'smem constant byte address 0x4 - core index']
  #allocation1 [shape = 'u32[144,128]{1,0:T(1,128)}', space=vmem, size = 0x12000, scoped, tag = 'internal scratch']
  %s0 = inlined_call_operand.vmem [shape: s32[32,1], index: 0, kind: input, shape index: {}]
  %s1 = inlined_call_operand.vmem [shape: f32[11,128], index: 1, kind: input, shape index: {}]
  %s2 = inlined_call_operand.hbm [shape: f32[32,128], index: 2, kind: output, shape index: {}]
  %s3 = sld [smem:[#allocation0]]
  $region41: #{tpu_custom_call.1} parent=0
    _
  %s5 = ssub.s32 1, %s3
  %s6 = scalar_select 0, %s5, %s3
  $region1: #{tpu_custom_call.1} parent=0
    #allocation2 [shape = 'u8[16384]{0}', space=vmem, size = 0x4000, scoped, tag = 'output window, operand 0']
    #allocation3 [shape = 's32[2]{0}', space=sflag, size = 0x8, scoped, tag = 'scoped memory for tpu_custom_call.1']
    %7 = vsyncpa [#allocation3], 0
    %s8 = scalar_lea.sflag [#allocation3], 1
    %9 = vsyncpa %s8, 0
    loop: start=0, step=1, limit=4
    $region2: #{tpu_custom_call.1} parent=1 // loop_pre_header
      _
    $region3: #{tpu_custom_call.1} parent=1 // loop_header
      %s11 = sphi 0, %s15
      %p12 = scmp.ge.s32.totalorder %s11, 4
      %s21 = sphi 0, %s23
      %s24 = sphi 0, %s21
      %s25 = sphi 0, %s24
      %s41 = sphi 0, %s25
      %s45 = sphi 0, %s45
      %s47 = sphi 0, %s45
      %s48 = sphi 0, %s47
      %s62 = sphi 0, %s48
      %s68 = sphi 0, %s70
      %s71 = sphi 0, %s68
      %s72 = sphi 0, %s71
      %s88 = sphi 0, %s72
    $region4: #{tpu_custom_call.1} parent=1 // loop_header_branch
      %14 = sbr.rel (%p12) target = $region8
    $region5: #{tpu_custom_call.1} parent=1 // loop_body
      %s16 = ssub.s32 %s11, 1
      %s17 = ssub.s32 %s11, 2
      %s18 = sadd.s32 %s11, 1
      %s19 = ssub.s32 %s11, %s18
      %p20 = scmp.eq.s32.totalorder %s19, 0
      %s22 = sadd.s32 %s21, 1
      %s23 = scalar_select %p20, %s21, %s22
      %p26 = pneg %p20
      %p27 = scmp.eq.s32.totalorder %s11, 1
      %p28 = por %p26, %p27
      %p29 = scmp.ne.s32.totalorder %s21, %s24
      %p30 = scmp.eq.s32.totalorder %s11, 0
      %p31 = por %p29, %p30
      %p32 = scmp.ne.s32.totalorder %s21, %s24
      %p33 = scmp.eq.s32.totalorder %s16, 1
      %p34 = por %p32, %p33
      %p35 = scmp.ne.s32.totalorder %s24, %s25
      %p36 = scmp.eq.s32.totalorder %s16, 0
      %p37 = por %p35, %p36
      %p38 = scmp.ne.s32.totalorder %s24, %s25
      %p39 = scmp.eq.s32.totalorder %s17, 1
      %p40 = por %p38, %p39
      %p42 = scmp.ne.s32.totalorder %s25, %s41
      %p43 = scmp.eq.s32.totalorder %s17, 0
      %p44 = por %p42, %p43
      %s46 = sadd.s32 %s45, 1
      %p49 = scmp.eq.s32.totalorder %s11, 1
      %p50 = scmp.ne.s32.totalorder %s45, %s47
      %p51 = scmp.eq.s32.totalorder %s11, 0
      %p52 = por %p50, %p51
      %p53 = scmp.ne.s32.totalorder %s45, %s47
      %p54 = scmp.eq.s32.totalorder %s16, 1
      %p55 = por %p53, %p54
      %p56 = scmp.ne.s32.totalorder %s47, %s48
      %p57 = scmp.eq.s32.totalorder %s16, 0
      %p58 = por %p56, %p57
      %p59 = scmp.ne.s32.totalorder %s47, %s48
      %p60 = scmp.eq.s32.totalorder %s17, 1
      %p61 = por %p59, %p60
      %p63 = scmp.ne.s32.totalorder %s48, %s62
      %p64 = scmp.eq.s32.totalorder %s17, 0
      %p65 = por %p63, %p64
      %s66 = ssub.s32 %s11, %s18
      %p67 = scmp.eq.s32.totalorder %s66, 0
      %s69 = sadd.s32 %s68, 1
      %s70 = scalar_select %p67, %s68, %s69
      %p73 = pneg %p67
      %p74 = scmp.eq.s32.totalorder %s11, 1
      %p75 = por %p73, %p74
      %p76 = scmp.ne.s32.totalorder %s68, %s71
      %p77 = scmp.eq.s32.totalorder %s11, 0
      %p78 = por %p76, %p77
      %p79 = scmp.ne.s32.totalorder %s68, %s71
      %p80 = scmp.eq.s32.totalorder %s16, 1
      %p81 = por %p79, %p80
      %p82 = scmp.ne.s32.totalorder %s71, %s72
      %p83 = scmp.eq.s32.totalorder %s16, 0
      %p84 = por %p82, %p83
      %p85 = scmp.ne.s32.totalorder %s71, %s72
      %p86 = scmp.eq.s32.totalorder %s17, 1
      %p87 = por %p85, %p86
      %p89 = scmp.ne.s32.totalorder %s72, %s88
      %p90 = scmp.eq.s32.totalorder %s17, 0
      %p91 = por %p89, %p90
      %p92 = scmp.le.s32.totalorder 1, %s11
      %p93 = scmp.lt.s32.totalorder %s11, 3
      %p94 = pnand %p92, %p93
      %p95 = pneg %p94
      // Predicated region
      $region9: #{tpu_custom_call.1} parent=5 // pred_check
        _
      $region10: #{tpu_custom_call.1} parent=5 // pred_check_branch
        %97 = sbr.rel (%p94) target = $region12
      $region11: #{tpu_custom_call.1} parent=5 // pred_region
        %s98 = ssub.s32 %s11, 1
        // Predicated region
        $region13: #{tpu_custom_call.1} parent=11 // pred_check
          %p99 = pneg %p58
        $region14: #{tpu_custom_call.1} parent=11 // pred_check_branch
          %101 = sbr.rel (%p99) target = $region16
        $region15: #{tpu_custom_call.1} parent=11 // pred_region
          _
        $region16: #{tpu_custom_call.1} parent=11 // pred_fallthru
          _
      $region12: #{tpu_custom_call.1} parent=5 // pred_fallthru
        _
      %p102 = scmp.lt.s32.totalorder %s11, 2
      // Predicated region
      $region17: #{tpu_custom_call.1} parent=5 // pred_check
        %p103 = pneg %p102
      $region18: #{tpu_custom_call.1} parent=5 // pred_check_branch
        %105 = sbr.rel (%p103) target = $region20
      $region19: #{tpu_custom_call.1} parent=5 // pred_region
        // Predicated region
        $region21: #{tpu_custom_call.1} parent=19 // pred_check
          %p106 = pneg %p31
        $region22: #{tpu_custom_call.1} parent=19 // pred_check_branch
          %108 = sbr.rel (%p106) target = $region24
        $region23: #{tpu_custom_call.1} parent=19 // pred_region
          %s109 = smul.u32 2, %s11
          %p110 = scmp.lt.s32.totalorder %s109, 3
          %s111 = scalar_select %p110, %s109, 3
          %s112 = smul.addr %s111, 8
          %s113 = scalar_lea.vmem %s0, %s112
          %s114 = smul.u32 2, %s11
        $region24: #{tpu_custom_call.1} parent=19 // pred_fallthru
          _
      $region20: #{tpu_custom_call.1} parent=5 // pred_fallthru
        _
      %p115 = scmp.le.s32.totalorder 1, %s11
      %p116 = scmp.lt.s32.totalorder %s11, 3
      %p117 = pnand %p115, %p116
      %p118 = pneg %p117
      // Predicated region
      $region25: #{tpu_custom_call.1} parent=5 // pred_check
        _
      $region26: #{tpu_custom_call.1} parent=5 // pred_check_branch
        %120 = sbr.rel (%p117) target = $region28
      $region27: #{tpu_custom_call.1} parent=5 // pred_region
        %s121 = ssub.s32 %s11, 1
        %s122 = smul.u32 2, %s16
        %p123 = scmp.lt.s32.totalorder %s122, 3
        %s124 = scalar_select %p123, %s122, 3
        %s125 = smul.addr %s124, 8
        %s126 = scalar_lea.vmem %s0, %s125
        %p127 = pneg %p37
        %p128 = pneg %p34
        %p129 = pneg %p58
        %p130 = pneg %p55
        %p131 = pneg %p84
        %p132 = pneg %p81
        %s133 = sand.u32 %s71, 1
        %s134 = scalar_lea.sflag [#allocation3], %s133
        %s135 = sand.u32 %s71, 1
        %s136 = smul.addr %s135, 16
        %s137 = scalar_lea.vmem [#allocation2], %s136
        %s138 = smul.u32 2, %s16
        %p139 = scmp.lt.s32.totalorder %s138, 3
        %s140 = scalar_select %p139, %s138, 3
        %s141 = smul.addr %s140, 8
        %s142 = scalar_lea.vmem %s0, %s141
        %s143 = smul.u32 2, %s16
        %s144 = smul.u32 2, %s16
        %v145 = vld [vmem:[%s142] sm:$0xff]
        %v146 = vld [vmem:[%s142 + $0x8] sm:$0xff]
        %v147 = vlaneseq
        %v148 = vand.u32 %v147, 127
        %149 = vset.pattern.permute.xlu0 0
        %150 = vperm.xlu0 %149, %v145
        %v151 = vpop.permute.xlu0 %150
        %152 = vset.pattern.permute.xlu0 0
        %153 = vperm.xlu0 %152, %v146
        %v154 = vpop.permute.xlu0 %153
        %vm155 = vcmp.eq.s32.totalorder %v148, %v151
        %vm156 = vcmp.eq.s32.totalorder %v148, %v154
        %v157 = vsel %vm155, 1, 0
        %v158 = vsel %vm156, 1, 0
        %v159 = vcvt.s32.f32 %v157
        %v160 = vcvt.s32.f32 %v158
        %v161 = vld [vmem:[%s1] sm:$0xff]
        %v162 = vld [vmem:[%s1 + $0x8] sm:$0x7]
        %vm163 = vcmask 89088
        %v165 = vsel %vm163, %v159, 0
        %v168 = vsel %vm163, %v160, 0
        %vm170 = vcmask 1042432
        %v172 = vsel %vm170, %v162, 0
        %174 = vmatprep.subr.mxu0 0.0
        %175 = vmatpush1.msra.mxu0 %v161
        %176 = vmatprep.subr.mxu0 0.0
        %177 = vmatpush1.msra.mxu0 %v172
        %178 = vmatprep.subr.mxu0 0.0
        %179 = vmatpush1.msra.mxu0 0.0
        %180 = vmatprep.subr.mxu0 0.0
        %181 = vmatpush1.msra.mxu0 0.0
        %182 = vmatprep.subr.mxu0 0.0
        %183 = vmatpush1.msra.mxu0 0.0
        %184 = vmatprep.subr.mxu0 0.0
        %185 = vmatpush1.msra.mxu0 0.0
        %186 = vmatprep.subr.mxu0 0.0
        %187 = vmatpush1.msra.mxu0 0.0
        %188 = vmatprep.subr.mxu0 0.0
        %189 = vmatpush1.msra.mxu0 0.0
        %190 = vmatprep.subr.mxu0 0.0
        %191 = vmatpush1.msra.mxu0 0.0
        %192 = vmatprep.subr.mxu0 0.0
        %193 = vmatpush1.msra.mxu0 0.0
        %194 = vmatprep.subr.mxu0 0.0
        %195 = vmatpush1.msra.mxu0 0.0
        %196 = vmatprep.subr.mxu0 0.0
        %197 = vmatpush1.msra.mxu0 0.0
        %198 = vmatprep.subr.mxu0 0.0
        %199 = vmatpush1.msra.mxu0 0.0
        %200 = vmatprep.subr.mxu0 0.0
        %201 = vmatpush1.msra.mxu0 0.0
        %202 = vmatprep.subr.mxu0 0.0
        %203 = vmatpush1.msra.mxu0 0.0
        %204 = vmatprep.subr.mxu0 0.0
        %205 = vmatpush1.msra.mxu0 0.0
        %206 = vmatprep.subr.mxu0 0.0
        %207 = vmatpush1.msra.mxu0 0.0
        %208 = vmatprep.subr.mxu0 0.0
        %209 = vmatpush1.msra.mxu0 0.0
        %210 = vmatprep.subr.mxu0 0.0
        %211 = vmatpush1.msra.mxu0 0.0
        %212 = vmatprep.subr.mxu0 0.0
        %213 = vmatpush1.msra.mxu0 0.0
        %214 = vmatprep.subr.mxu0 0.0
        %215 = vmatpush1.msra.mxu0 0.0
        %216 = vmatprep.subr.mxu0 0.0
        %217 = vmatpush1.msra.mxu0 0.0
        %218 = vmatprep.subr.mxu0 0.0
        %219 = vmatpush1.msra.mxu0 0.0
        %220 = vmatprep.subr.mxu0 0.0
        %221 = vmatpush1.msra.mxu0 0.0
        %222 = vmatprep.subr.mxu0 0.0
        %223 = vmatpush1.msra.mxu0 0.0
        %224 = vmatprep.subr.mxu0 0.0
        %225 = vmatpush1.msra.mxu0 0.0
        %226 = vmatprep.subr.mxu0 0.0
        %227 = vmatpush1.msra.mxu0 0.0
        %228 = vmatprep.subr.mxu0 0.0
        %229 = vmatpush1.msra.mxu0 0.0
        %230 = vmatprep.subr.mxu0 0.0
        %231 = vmatpush1.msra.mxu0 0.0
        %232 = vmatprep.subr.mxu0 0.0
        %233 = vmatpush1.msra.mxu0 0.0
        %234 = vmatprep.subr.mxu0 0.0
        %235 = vmatpush1.msra.mxu0 0.0
        %236 = vmatprep.subr.mxu0 0.0
        %237 = vmatpush1.msra.mxu0 0.0
        %238 = vmatprep.mubr.f32.mxu0 0.0
        %239 = vmatmul.mubr.f32.gmra.mrb[0].mxu0 %v165
        %v240 = vpop.f32.mrb[0].mxu0
        %v241 = vadd.f32 0.0, %v240
        %v242 = vpop.f32.mrb[0].mxu0
        %243 = vmatprep.mubr.f32.mxu0 0.0
        %244 = vmatmul.mubr.f32.gmra.mrb[0].mxu0 %v168
        %v245 = vpop.f32.mrb[0].mxu0
        %v246 = vadd.f32 0.0, %v245
        %v247 = vpop.f32.mrb[0].mxu0
        %248 = vdwg.mxu0
        %249 = vst [vmem:[%s137] sm:$0xff] %v241
        %250 = vst [vmem:[%s137 + $0x8] sm:$0xff] %v246
        %s251 = sand.u32 %s71, 1
        %s252 = scalar_lea.sflag [#allocation3], %s251
        %s253 = sand.u32 %s71, 1
        %s254 = smul.addr %s253, 16
        %s255 = scalar_lea.vmem [#allocation2], %s254
        // Predicated region
        $region29: #{tpu_custom_call.1} parent=27 // pred_check
          %p256 = pneg %p81
        $region30: #{tpu_custom_call.1} parent=27 // pred_check_branch
          %258 = sbr.rel (%p256) target = $region32
        $region31: #{tpu_custom_call.1} parent=27 // pred_region
          %s259 = smul.u32 2, %s16
          %s261 = ssub.s32 256, 256
          %262 = vsyncadd %s252, %s261
          %s263 = smul.addr %s259, 128
          %s264 = scalar_lea.hbm %s2, %s263
          %s265 = sshll.u32 %s255, 4
          %s266 = int_to_ptr.vmem [resolvable:$true] %s265
          %271 = dma.vmem_to_hbm [thread:$0]  %s266, 256, %s264, %s252, 128, 128, 8
        $region32: #{tpu_custom_call.1} parent=27 // pred_fallthru
          _
      $region28: #{tpu_custom_call.1} parent=5 // pred_fallthru
        _
      %p272 = scmp.le.s32.totalorder 2, %s11
      // Predicated region
      $region33: #{tpu_custom_call.1} parent=5 // pred_check
        %p273 = pneg %p272
      $region34: #{tpu_custom_call.1} parent=5 // pred_check_branch
        %275 = sbr.rel (%p273) target = $region36
      $region35: #{tpu_custom_call.1} parent=5 // pred_region
        %s276 = ssub.s32 %s11, 2
        // Predicated region
        $region37: #{tpu_custom_call.1} parent=35 // pred_check
          %p277 = pneg %p87
        $region38: #{tpu_custom_call.1} parent=35 // pred_check_branch
          %279 = sbr.rel (%p277) target = $region40
        $region39: #{tpu_custom_call.1} parent=35 // pred_region
          %s280 = sand.u32 %s72, 1
          %s281 = scalar_lea.sflag [#allocation3], %s280
          %s282 = sand.u32 %s72, 1
          %s283 = smul.addr %s282, 16
          %s284 = scalar_lea.vmem [#allocation2], %s283
          %285 = dma.done %s281, 256
        $region40: #{tpu_custom_call.1} parent=35 // pred_fallthru
          _
      $region36: #{tpu_custom_call.1} parent=5 // pred_fallthru
        _
    $region6: #{tpu_custom_call.1} parent=1 // loop_footer
      %s15 = sadd.s32 1, %s11
    $region7: #{tpu_custom_call.1} parent=1 // loop_footer_branch
      %10 = sbr.rel target = $region3
    $region8: #{tpu_custom_call.1} parent=1 // loop_exit
      _
    %286 = vsyncpa [#allocation3], 1
    %s287 = scalar_lea.sflag [#allocation3], 1
    %288 = vsyncpa %s287, 1

// kernel: tpu_custom_call.1
$region0: #{tpu_custom_call.1}
  #allocation0 [shape = 'u32[]', space=smem, size = 0x4, offset = 0x4, fixed_abs, tag = 'smem constant byte address 0x4 - core index']
  #allocation1 [shape = 'u32[144,128]{1,0:T(1,128)}', space=vmem, size = 0x12000, scoped, tag = 'internal scratch']
  %s0 = inlined_call_operand.vmem [shape: s32[32,1], index: 0, kind: input, shape index: {}]
  %s1 = inlined_call_operand.vmem [shape: f32[11,128], index: 1, kind: input, shape index: {}]
  %s2 = inlined_call_operand.hbm [shape: f32[32,128], index: 2, kind: output, shape index: {}]
  %s3 = sld [smem:[#allocation0]]
  $region41: #{tpu_custom_call.1} parent=0
    _
  %s5 = ssub.s32 1, %s3
  %s6 = scalar_select 0, %s5, %s3
  $region1: #{tpu_custom_call.1} parent=0
    #allocation2 [shape = 'u8[16384]{0}', space=vmem, size = 0x4000, scoped, tag = 'output window, operand 0']
    #allocation3 [shape = 's32[2]{0}', space=sflag, size = 0x8, scoped, tag = 'scoped memory for tpu_custom_call.1']
    %7 = vsyncpa [#allocation3], 0
    %s8 = scalar_lea.sflag [#allocation3], 1
    %9 = vsyncpa %s8, 0
    loop: start=0, step=1, limit=4
    $region2: #{tpu_custom_call.1} parent=1 // loop_pre_header
      _
    $region3: #{tpu_custom_call.1} parent=1 // loop_header
      %s11 = sphi 0, %s15
      %p12 = scmp.ge.s32.totalorder %s11, 4
      %s21 = sphi 0, %s23
      %s24 = sphi 0, %s21
      %s25 = sphi 0, %s24
      %s41 = sphi 0, %s25
      %s45 = sphi 0, %s45
      %s47 = sphi 0, %s45
      %s48 = sphi 0, %s47
      %s62 = sphi 0, %s48
      %s68 = sphi 0, %s70
      %s71 = sphi 0, %s68
      %s72 = sphi 0, %s71
      %s88 = sphi 0, %s72
    $region4: #{tpu_custom_call.1} parent=1 // loop_header_branch
      %14 = sbr.rel (%p12) target = $region8
    $region5: #{tpu_custom_call.1} parent=1 // loop_body
      %s16 = ssub.s32 %s11, 1
      %s17 = ssub.s32 %s11, 2
      %s18 = sadd.s32 %s11, 1
      %s19 = ssub.s32 %s11, %s18
      %p20 = scmp.eq.s32.totalorder %s19, 0
      %s22 = sadd.s32 %s21, 1
      %s23 = scalar_select %p20, %s21, %s22
      %p26 = pneg %p20
      %p27 = scmp.eq.s32.totalorder %s11, 1
      %p28 = por %p26, %p27
      %p29 = scmp.ne.s32.totalorder %s21, %s24
      %p30 = scmp.eq.s32.totalorder %s11, 0
      %p31 = por %p29, %p30
      %p32 = scmp.ne.s32.totalorder %s21, %s24
      %p33 = scmp.eq.s32.totalorder %s16, 1
      %p34 = por %p32, %p33
      %p35 = scmp.ne.s32.totalorder %s24, %s25
      %p36 = scmp.eq.s32.totalorder %s16, 0
      %p37 = por %p35, %p36
      %p38 = scmp.ne.s32.totalorder %s24, %s25
      %p39 = scmp.eq.s32.totalorder %s17, 1
      %p40 = por %p38, %p39
      %p42 = scmp.ne.s32.totalorder %s25, %s41
      %p43 = scmp.eq.s32.totalorder %s17, 0
      %p44 = por %p42, %p43
      %s46 = sadd.s32 %s45, 1
      %p49 = scmp.eq.s32.totalorder %s11, 1
      %p50 = scmp.ne.s32.totalorder %s45, %s47
      %p51 = scmp.eq.s32.totalorder %s11, 0
      %p52 = por %p50, %p51
      %p53 = scmp.ne.s32.totalorder %s45, %s47
      %p54 = scmp.eq.s32.totalorder %s16, 1
      %p55 = por %p53, %p54
      %p56 = scmp.ne.s32.totalorder %s47, %s48
      %p57 = scmp.eq.s32.totalorder %s16, 0
      %p58 = por %p56, %p57
      %p59 = scmp.ne.s32.totalorder %s47, %s48
      %p60 = scmp.eq.s32.totalorder %s17, 1
      %p61 = por %p59, %p60
      %p63 = scmp.ne.s32.totalorder %s48, %s62
      %p64 = scmp.eq.s32.totalorder %s17, 0
      %p65 = por %p63, %p64
      %s66 = ssub.s32 %s11, %s18
      %p67 = scmp.eq.s32.totalorder %s66, 0
      %s69 = sadd.s32 %s68, 1
      %s70 = scalar_select %p67, %s68, %s69
      %p73 = pneg %p67
      %p74 = scmp.eq.s32.totalorder %s11, 1
      %p75 = por %p73, %p74
      %p76 = scmp.ne.s32.totalorder %s68, %s71
      %p77 = scmp.eq.s32.totalorder %s11, 0
      %p78 = por %p76, %p77
      %p79 = scmp.ne.s32.totalorder %s68, %s71
      %p80 = scmp.eq.s32.totalorder %s16, 1
      %p81 = por %p79, %p80
      %p82 = scmp.ne.s32.totalorder %s71, %s72
      %p83 = scmp.eq.s32.totalorder %s16, 0
      %p84 = por %p82, %p83
      %p85 = scmp.ne.s32.totalorder %s71, %s72
      %p86 = scmp.eq.s32.totalorder %s17, 1
      %p87 = por %p85, %p86
      %p89 = scmp.ne.s32.totalorder %s72, %s88
      %p90 = scmp.eq.s32.totalorder %s17, 0
      %p91 = por %p89, %p90
      %p92 = scmp.le.s32.totalorder 1, %s11
      %p93 = scmp.lt.s32.totalorder %s11, 3
      %p94 = pnand %p92, %p93
      %p95 = pneg %p94
      // Predicated region
      $region9: #{tpu_custom_call.1} parent=5 // pred_check
        _
      $region10: #{tpu_custom_call.1} parent=5 // pred_check_branch
        %97 = sbr.rel (%p94) target = $region12
      $region11: #{tpu_custom_call.1} parent=5 // pred_region
        %s98 = ssub.s32 %s11, 1
        // Predicated region
        $region13: #{tpu_custom_call.1} parent=11 // pred_check
          %p99 = pneg %p58
        $region14: #{tpu_custom_call.1} parent=11 // pred_check_branch
          %101 = sbr.rel (%p99) target = $region16
        $region15: #{tpu_custom_call.1} parent=11 // pred_region
          _
        $region16: #{tpu_custom_call.1} parent=11 // pred_fallthru
          _
      $region12: #{tpu_custom_call.1} parent=5 // pred_fallthru
        _
      %p102 = scmp.lt.s32.totalorder %s11, 2
      // Predicated region
      $region17: #{tpu_custom_call.1} parent=5 // pred_check
        %p103 = pneg %p102
      $region18: #{tpu_custom_call.1} parent=5 // pred_check_branch
        %105 = sbr.rel (%p103) target = $region20
      $region19: #{tpu_custom_call.1} parent=5 // pred_region
        // Predicated region
        $region21: #{tpu_custom_call.1} parent=19 // pred_check
          %p106 = pneg %p31
        $region22: #{tpu_custom_call.1} parent=19 // pred_check_branch
          %108 = sbr.rel (%p106) target = $region24
        $region23: #{tpu_custom_call.1} parent=19 // pred_region
          %s109 = smul.u32 2, %s11
          %p110 = scmp.lt.s32.totalorder %s109, 3
          %s111 = scalar_select %p110, %s109, 3
          %s112 = smul.addr %s111, 8
          %s113 = scalar_lea.vmem %s0, %s112
          %s114 = smul.u32 2, %s11
        $region24: #{tpu_custom_call.1} parent=19 // pred_fallthru
          _
      $region20: #{tpu_custom_call.1} parent=5 // pred_fallthru
        _
      %p115 = scmp.le.s32.totalorder 1, %s11
      %p116 = scmp.lt.s32.totalorder %s11, 3
      %p117 = pnand %p115, %p116
      %p118 = pneg %p117
      // Predicated region
      $region25: #{tpu_custom_call.1} parent=5 // pred_check
        _
      $region26: #{tpu_custom_call.1} parent=5 // pred_check_branch
        %120 = sbr.rel (%p117) target = $region28
      $region27: #{tpu_custom_call.1} parent=5 // pred_region
        %s121 = ssub.s32 %s11, 1
        %s122 = smul.u32 2, %s16
        %p123 = scmp.lt.s32.totalorder %s122, 3
        %s124 = scalar_select %p123, %s122, 3
        %s125 = smul.addr %s124, 8
        %s126 = scalar_lea.vmem %s0, %s125
        %p127 = pneg %p37
        %p128 = pneg %p34
        %p129 = pneg %p58
        %p130 = pneg %p55
        %p131 = pneg %p84
        %p132 = pneg %p81
        %s133 = sand.u32 %s71, 1
        %s134 = scalar_lea.sflag [#allocation3], %s133
        %s135 = sand.u32 %s71, 1
        %s136 = smul.addr %s135, 16
        %s137 = scalar_lea.vmem [#allocation2], %s136
        %s138 = smul.u32 2, %s16
        %p139 = scmp.lt.s32.totalorder %s138, 3
        %s140 = scalar_select %p139, %s138, 3
        %s141 = smul.addr %s140, 8
        %s142 = scalar_lea.vmem %s0, %s141
        %s143 = smul.u32 2, %s16
        %s144 = smul.u32 2, %s16
        %v145 = vld [vmem:[%s142] sm:$0xff]
        %v146 = vld [vmem:[%s142 + $0x8] sm:$0xff]
        %v147 = vlaneseq
        %v148 = vand.u32 %v147, 127
        %149 = vset.pattern.permute.xlu0 0
        %150 = vperm.xlu0 %149, %v145
        %v151 = vpop.permute.xlu0 %150
        %152 = vset.pattern.permute.xlu0 0
        %153 = vperm.xlu0 %152, %v146
        %v154 = vpop.permute.xlu0 %153
        %vm155 = vcmp.eq.s32.totalorder %v148, %v151
        %vm156 = vcmp.eq.s32.totalorder %v148, %v154
        %v157 = vsel %vm155, 1, 0
        %v158 = vsel %vm156, 1, 0
        %v159 = vcvt.s32.f32 %v157
        %v160 = vcvt.s32.f32 %v158
        %v161 = vld [vmem:[%s1] sm:$0xff]
        %v162 = vld [vmem:[%s1 + $0x8] sm:$0x7]
        %vm163 = vcmask 89088
        %v165 = vsel %vm163, %v159, 0
        %v168 = vsel %vm163, %v160, 0
        %vm170 = vcmask 1042432
        %v172 = vsel %vm170, %v162, 0
        %174 = vmatprep.subr.mxu0 0.0
        %175 = vmatpush1.msra.mxu0 %v161
        %176 = vmatprep.subr.mxu0 0.0
        %177 = vmatpush1.msra.mxu0 %v172
        %178 = vmatprep.subr.mxu0 0.0
        %179 = vmatpush1.msra.mxu0 0.0
        %180 = vmatprep.subr.mxu0 0.0
        %181 = vmatpush1.msra.mxu0 0.0
        %182 = vmatprep.subr.mxu0 0.0
        %183 = vmatpush1.msra.mxu0 0.0
        %184 = vmatprep.subr.mxu0 0.0
        %185 = vmatpush1.msra.mxu0 0.0
        %186 = vmatprep.subr.mxu0 0.0
        %187 = vmatpush1.msra.mxu0 0.0
        %188 = vmatprep.subr.mxu0 0.0
        %189 = vmatpush1.msra.mxu0 0.0
        %190 = vmatprep.subr.mxu0 0.0
        %191 = vmatpush1.msra.mxu0 0.0
        %192 = vmatprep.subr.mxu0 0.0
        %193 = vmatpush1.msra.mxu0 0.0
        %194 = vmatprep.subr.mxu0 0.0
        %195 = vmatpush1.msra.mxu0 0.0
        %196 = vmatprep.subr.mxu0 0.0
        %197 = vmatpush1.msra.mxu0 0.0
        %198 = vmatprep.subr.mxu0 0.0
        %199 = vmatpush1.msra.mxu0 0.0
        %200 = vmatprep.subr.mxu0 0.0
        %201 = vmatpush1.msra.mxu0 0.0
        %202 = vmatprep.subr.mxu0 0.0
        %203 = vmatpush1.msra.mxu0 0.0
        %204 = vmatprep.subr.mxu0 0.0
        %205 = vmatpush1.msra.mxu0 0.0
        %206 = vmatprep.subr.mxu0 0.0
        %207 = vmatpush1.msra.mxu0 0.0
        %208 = vmatprep.subr.mxu0 0.0
        %209 = vmatpush1.msra.mxu0 0.0
        %210 = vmatprep.subr.mxu0 0.0
        %211 = vmatpush1.msra.mxu0 0.0
        %212 = vmatprep.subr.mxu0 0.0
        %213 = vmatpush1.msra.mxu0 0.0
        %214 = vmatprep.subr.mxu0 0.0
        %215 = vmatpush1.msra.mxu0 0.0
        %216 = vmatprep.subr.mxu0 0.0
        %217 = vmatpush1.msra.mxu0 0.0
        %218 = vmatprep.subr.mxu0 0.0
        %219 = vmatpush1.msra.mxu0 0.0
        %220 = vmatprep.subr.mxu0 0.0
        %221 = vmatpush1.msra.mxu0 0.0
        %222 = vmatprep.subr.mxu0 0.0
        %223 = vmatpush1.msra.mxu0 0.0
        %224 = vmatprep.subr.mxu0 0.0
        %225 = vmatpush1.msra.mxu0 0.0
        %226 = vmatprep.subr.mxu0 0.0
        %227 = vmatpush1.msra.mxu0 0.0
        %228 = vmatprep.subr.mxu0 0.0
        %229 = vmatpush1.msra.mxu0 0.0
        %230 = vmatprep.subr.mxu0 0.0
        %231 = vmatpush1.msra.mxu0 0.0
        %232 = vmatprep.subr.mxu0 0.0
        %233 = vmatpush1.msra.mxu0 0.0
        %234 = vmatprep.subr.mxu0 0.0
        %235 = vmatpush1.msra.mxu0 0.0
        %236 = vmatprep.subr.mxu0 0.0
        %237 = vmatpush1.msra.mxu0 0.0
        %238 = vmatprep.mubr.f32.mxu0 0.0
        %239 = vmatmul.mubr.f32.gmra.mrb[0].mxu0 %v165
        %v240 = vpop.f32.mrb[0].mxu0
        %v241 = vadd.f32 0.0, %v240
        %v242 = vpop.f32.mrb[0].mxu0
        %243 = vmatprep.mubr.f32.mxu0 0.0
        %244 = vmatmul.mubr.f32.gmra.mrb[0].mxu0 %v168
        %v245 = vpop.f32.mrb[0].mxu0
        %v246 = vadd.f32 0.0, %v245
        %v247 = vpop.f32.mrb[0].mxu0
        %248 = vdwg.mxu0
        %249 = vst [vmem:[%s137] sm:$0xff] %v241
        %250 = vst [vmem:[%s137 + $0x8] sm:$0xff] %v246
        %s251 = sand.u32 %s71, 1
        %s252 = scalar_lea.sflag [#allocation3], %s251
        %s253 = sand.u32 %s71, 1
        %s254 = smul.addr %s253, 16
        %s255 = scalar_lea.vmem [#allocation2], %s254
        // Predicated region
        $region29: #{tpu_custom_call.1} parent=27 // pred_check
          %p256 = pneg %p81
        $region30: #{tpu_custom_call.1} parent=27 // pred_check_branch
          %258 = sbr.rel (%p256) target = $region32
        $region31: #{tpu_custom_call.1} parent=27 // pred_region
          %s259 = smul.u32 2, %s16
          %s261 = ssub.s32 256, 256
          %262 = vsyncadd %s252, %s261
          %s263 = smul.addr %s259, 128
          %s264 = scalar_lea.hbm %s2, %s263
          %s265 = sshll.u32 %s255, 4
          %s266 = int_to_ptr.vmem [resolvable:$true] %s265
          %271 = dma.vmem_to_hbm [thread:$0]  %s266, 256, %s264, %s252, 128, 128, 8
        $region32: #{tpu_custom_call.1} parent=27 // pred_fallthru
          _
      $region28: #{tpu_custom_call.1} parent=5 // pred_fallthru
        _
      %p272 = scmp.le.s32.totalorder 2, %s11
      // Predicated region
      $region33: #{tpu_custom_call.1} parent=5 // pred_check
        %p273 = pneg %p272
      $region34: #{tpu_custom_call.1} parent=5 // pred_check_branch
        %275 = sbr.rel (%p273) target = $region36
      $region35: #{tpu_custom_call.1} parent=5 // pred_region
        %s276 = ssub.s32 %s11, 2
        // Predicated region
        $region37: #{tpu_custom_call.1} parent=35 // pred_check
          %p277 = pneg %p87
        $region38: #{tpu_custom_call.1} parent=35 // pred_check_branch
          %279 = sbr.rel (%p277) target = $region40
        $region39: #{tpu_custom_call.1} parent=35 // pred_region
          %s280 = sand.u32 %s72, 1
          %s281 = scalar_lea.sflag [#allocation3], %s280
          %s282 = sand.u32 %s72, 1
          %s283 = smul.addr %s282, 16
          %s284 = scalar_lea.vmem [#allocation2], %s283
          %285 = dma.done %s281, 256
        $region40: #{tpu_custom_call.1} parent=35 // pred_fallthru
          _
      $region36: #{tpu_custom_call.1} parent=5 // pred_fallthru
        _
    $region6: #{tpu_custom_call.1} parent=1 // loop_footer
      %s15 = sadd.s32 1, %s11
    $region7: #{tpu_custom_call.1} parent=1 // loop_footer_branch
      %10 = sbr.rel target = $region3
    $region8: #{tpu_custom_call.1} parent=1 // loop_exit
      _
    %286 = vsyncpa [#allocation3], 1
    %s287 = scalar_lea.sflag [#allocation3], 1
    %288 = vsyncpa %s287, 1

</llo_original>
